<compile_context>
chip_gen: v5e
topology: v5e:2x2
jax: 0.10.0
libtpu: 0.0.40
codegen_flags: <defaults>
</compile_context>

<pallas_src>
import jax
import jax.numpy as jnp
from jax import lax
from jax.experimental import pallas as pl
from jax.experimental.pallas import tpu as pltpu


# ---------------------------------------------------------------------------
# numerics helpers (shared by kernel and reference)
# ---------------------------------------------------------------------------
def _sigmoid(v):
    # single-tanh form: one EUP op instead of exp + reciprocal, and stable.
    return 0.5 * (jnp.tanh(0.5 * v) + 1.0)


def _softplus(v):
    # numerically stable; only used host-side (precomputed on parameter A).
    return jnp.maximum(v, 0.0) + jnp.log1p(jnp.exp(-jnp.abs(v)))


def _gelu_tanh(v):
    c = 0.7978845608028654  # sqrt(2/pi)
    return 0.5 * v * (1.0 + jnp.tanh(c * (v + 0.044715 * v * v * v)))


def _divisor_tile(n, target):
    """Largest tile <= target that divides n (falls back gracefully)."""
    t = min(n, target)
    while n % t:
        t -= 1
    return t


# ---------------------------------------------------------------------------
# fused linear_y + linear_x  (shares the LHS load; tiled over M, N and K)
# ---------------------------------------------------------------------------
def _linear_xy_kernel(h_ref, wy_ref, wx_ref, bx_ref, y_ref, x_ref, accy, accx):
    k = pl.program_id(2)

    @pl.when(k == 0)
    def _():
        accy[...] = jnp.zeros_like(accy)
        accx[...] = jnp.zeros_like(accx)

    h = h_ref[...]
    accy[...] += jnp.dot(h, wy_ref[...], preferred_element_type=jnp.float32)
    accx[...] += jnp.dot(h, wx_ref[...], preferred_element_type=jnp.float32)

    @pl.when(k == pl.num_programs(2) - 1)
    def _():
        y_ref[...] = accy[...].astype(y_ref.dtype)
        x_ref[...] = (accx[...] + bx_ref[...].astype(jnp.float32)).astype(x_ref.dtype)


def linear_xy(h, wy, wx, bx, *, tm=256, tn=256, tk=512):
    M, D = h.shape
    N = wx.shape[1]
    TM = _divisor_tile(M, tm)
    TN = _divisor_tile(N, tn)
    TK = _divisor_tile(D, tk)
    return pl.pallas_call(
        _linear_xy_kernel,
        out_shape=(jax.ShapeDtypeStruct((M, N), h.dtype),
                   jax.ShapeDtypeStruct((M, N), h.dtype)),
        grid=(M // TM, N // TN, D // TK),
        in_specs=[pl.BlockSpec((TM, TK), lambda i, j, k: (i, k)),
                  pl.BlockSpec((TK, TN), lambda i, j, k: (k, j)),
                  pl.BlockSpec((TK, TN), lambda i, j, k: (k, j)),
                  pl.BlockSpec((1, TN), lambda i, j, k: (0, j))],
        out_specs=(pl.BlockSpec((TM, TN), lambda i, j, k: (i, j)),
                   pl.BlockSpec((TM, TN), lambda i, j, k: (i, j))),
        scratch_shapes=[pltpu.VMEM((TM, TN), jnp.float32),
                        pltpu.VMEM((TM, TN), jnp.float32)],
        compiler_params=pltpu.CompilerParams(
            dimension_semantics=("parallel", "parallel", "arbitrary")),
    )(h, wy, wx, bx.reshape(1, N).astype(h.dtype))


# ---------------------------------------------------------------------------
# plain tiled linear with K-accumulation (for linear_out)
# ---------------------------------------------------------------------------
def _linear_kernel(x_ref, w_ref, b_ref, o_ref, acc):
    k = pl.program_id(2)

    @pl.when(k == 0)
    def _():
        acc[...] = jnp.zeros_like(acc)

    acc[...] += jnp.dot(x_ref[...], w_ref[...], preferred_element_type=jnp.float32)

    @pl.when(k == pl.num_programs(2) - 1)
    def _():
        o_ref[...] = (acc[...] + b_ref[...].astype(jnp.float32)).astype(o_ref.dtype)


def linear(x, w, b=None, *, tm=256, tn=256, tk=512):
    M, K = x.shape
    N = w.shape[1]
    TM = _divisor_tile(M, tm)
    TN = _divisor_tile(N, tn)
    TK = _divisor_tile(K, tk)
    bias = jnp.zeros((1, N), x.dtype) if b is None else b.reshape(1, N).astype(x.dtype)
    return pl.pallas_call(
        _linear_kernel,
        out_shape=jax.ShapeDtypeStruct((M, N), x.dtype),
        grid=(M // TM, N // TN, K // TK),
        in_specs=[pl.BlockSpec((TM, TK), lambda i, j, k: (i, k)),
                  pl.BlockSpec((TK, TN), lambda i, j, k: (k, j)),
                  pl.BlockSpec((1, TN), lambda i, j, k: (0, j))],
        out_specs=pl.BlockSpec((TM, TN), lambda i, j, k: (i, j)),
        scratch_shapes=[pltpu.VMEM((TM, TN), jnp.float32)],
        compiler_params=pltpu.CompilerParams(
            dimension_semantics=("parallel", "parallel", "arbitrary")),
    )(x, w, bias)


# ---------------------------------------------------------------------------
# fused conv1d + grouped gates + RG-LRU
#   grid = (B, L_chunks); B "parallel" (megacore), L "arbitrary".
#   conv history and LRU hidden state are carried in VMEM scratch across the
#   L-chunk axis and flushed to the state outputs on the final chunk.
# ---------------------------------------------------------------------------
def _fused_kernel(x_ref, y_ref, cs_ref, h0_ref, cw_ref, cb_ref,
                  gwx_ref, gwa_ref, gxb_ref, gab_ref, yb_ref, m8sA_ref,
                  out_ref, cs_out_ref, h_out_ref,
                  conv_carry, h_carry):
    f32 = jnp.float32
    lc = pl.program_id(1)
    n_lc = pl.num_programs(1)
    TL, N = out_ref.shape
    W = cs_ref.shape[0]

    # -- initialize carries from the incoming states on the first L-chunk --
    @pl.when(lc == 0)
    def _():
        conv_carry[...] = cs_ref[...].astype(f32)
        h_carry[...] = h0_ref[...].astype(f32)

    x = x_ref[...].astype(f32)                       # (TL, N)
    hist = conv_carry[...]                           # (W, N)

    # -- depthwise causal conv1d along the chunk (d_conv static taps) --
    padded = jnp.concatenate([hist, x], axis=0)      # (W+TL, N)
    acc = jnp.broadcast_to(cb_ref[...].astype(f32), (TL, N))
    for k in range(W + 1):
        acc = acc + padded[k:k + TL, :] * cw_ref[pl.ds(k, 1), :].astype(f32)
    x_conv = acc
    conv_carry[...] = padded[TL:TL + W, :]           # new conv history

    # -- grouped (block-diagonal) gate matmuls, per-head MXU dots --
    nb, dper, _ = gwx_ref.shape
    gx_parts, ga_parts = [], []
    for h in range(nb):                              # static unroll over heads
        xh = x_conv[:, h * dper:(h + 1) * dper]      # one LHS slice, two dots
        gx_parts.append(jnp.dot(xh, gwx_ref[h], preferred_element_type=f32))
        ga_parts.append(jnp.dot(xh, gwa_ref[h], preferred_element_type=f32))
    gx = gx_parts[0] if nb == 1 else jnp.concatenate(gx_parts, axis=1)
    ga = ga_parts[0] if nb == 1 else jnp.concatenate(ga_parts, axis=1)

    gate_x = _sigmoid(gx + gxb_ref[...].astype(f32))
    gate_a = _sigmoid(ga + gab_ref[...].astype(f32))
    log_a = gate_a * m8sA_ref[...].astype(f32)       # m8sA = -8 * softplus(A)
    a = jnp.exp(log_a)
    x_in = x_conv * gate_x * jnp.sqrt(1.0 - a * a)   # a*a instead of exp(2*log_a)
    gy = _gelu_tanh(y_ref[...].astype(f32) + yb_ref[...].astype(f32))

    # -- blocked (log-depth) linear scan over the chunk --
    # inclusive scan of (a_t, b_t) under (A1,B1) o (A2,B2) = (A1*A2, A2*B1+B2)
    a_c, b_c = a, x_in
    d = 1
    while d < TL:                                    # ceil(log2(TL)) steps
        a_prev = jnp.concatenate(
            [jnp.ones((d, N), f32), a_c[:TL - d, :]], axis=0)
        b_prev = jnp.concatenate(
            [jnp.zeros((d, N), f32), b_c[:TL - d, :]], axis=0)
        b_c = b_c + a_c * b_prev
        a_c = a_c * a_prev
        d *= 2
    h0 = h_carry[...]                                # (1, N) carried state
    h_all = b_c + a_c * h0                           # (TL, N)
    out_ref[...] = (h_all * gy).astype(out_ref.dtype)
    h_carry[...] = h_all[TL - 1:TL, :]

    # -- flush the updated states on the last chunk of this batch row --
    @pl.when(lc == n_lc - 1)
    def _():
        cs_out_ref[...] = conv_carry[...].astype(cs_out_ref.dtype)
        h_out_ref[...] = h_carry[...].astype(h_out_ref.dtype)


def fused_conv_gates_lru(x, y, conv_state, lru_state, conv_w, conv_b,
                         gate_x_w, gate_a_w, gate_x_b, gate_a_b,
                         y_bias, m8sA, *, tl_target=128):
    B, L, N = x.shape
    W = conv_state.shape[1]
    nb, dper, _ = gate_x_w.shape
    TL = _divisor_tile(L, tl_target)
    Lc = L // TL

    seq = pl.BlockSpec((None, TL, N), lambda b, l: (b, l, 0))
    st_conv = pl.BlockSpec((None, W, N), lambda b, l: (b, 0, 0))
    st_h = pl.BlockSpec((None, 1, N), lambda b, l: (b, 0, 0))
    vec = pl.BlockSpec((1, N), lambda b, l: (0, 0))
    gw = pl.BlockSpec((nb, dper, dper), lambda b, l: (0, 0, 0))

    out, cs_out, h_out = pl.pallas_call(
        _fused_kernel,
        out_shape=(jax.ShapeDtypeStruct((B, L, N), x.dtype),
                   jax.ShapeDtypeStruct((B, W, N), conv_state.dtype),
                   jax.ShapeDtypeStruct((B, 1, N), lru_state.dtype)),
        grid=(B, Lc),
        in_specs=[seq, seq, st_conv, st_h,
                  pl.BlockSpec((W + 1, N), lambda b, l: (0, 0)),  # conv taps
                  vec,                                            # conv bias
                  gw, gw, vec, vec, vec, vec],
        out_specs=(seq, st_conv, st_h),
        scratch_shapes=[pltpu.VMEM((W, N), jnp.float32),    # conv history carry
                        pltpu.VMEM((1, N), jnp.float32)],   # lru hidden carry
        compiler_params=pltpu.CompilerParams(
            dimension_semantics=("parallel", "arbitrary")),
    )(x, y, conv_state, lru_state.reshape(B, 1, N),
      conv_w, conv_b.reshape(1, N),
      gate_x_w, gate_a_w,
      gate_x_b.reshape(1, N), gate_a_b.reshape(1, N),
      y_bias.reshape(1, N), m8sA.reshape(1, N))
    return out, cs_out, h_out.reshape(B, N)


# ---------------------------------------------------------------------------
# Recurrent forward (thin JAX glue, hot paths in Pallas)
# ---------------------------------------------------------------------------
def recurrent_forward(params, hidden_states, conv_state, lru_state,
                      host_request_types, last_token_ids):
    del host_request_types, last_token_ids  # TODO(synk): context-only path modeled
    B, L, D = hidden_states.shape
    N = params["linear_x_w"].shape[1]

    h2d = hidden_states.reshape(B * L, D)
    y2d, x2d = linear_xy(h2d, params["linear_y_w"], params["linear_x_w"],
                         params["linear_x_b"])
    x3 = x2d.reshape(B, L, N)
    y3 = y2d.reshape(B, L, N)

    # parameter-only transcendental hoisted out of the kernel: -8 * softplus(A)
    m8sA = -8.0 * _softplus(params["A"])

    out_lru, conv_state_out, lru_state_out = fused_conv_gates_lru(
        x3, y3, conv_state, lru_state,
        params["conv_w"], params["conv_b"],
        params["gate_x_w"], params["gate_a_w"],
        params["gate_x_b"], params["gate_a_b"],
        params["y_bias"], m8sA)

    out = linear(out_lru.reshape(B * L, N),
                 params["linear_out_w"], params["linear_out_b"]).reshape(B, L, D)
    return out, conv_state_out, lru_state_out


# ---------------------------------------------------------------------------
# Pure-JAX reference (same math, same helpers)
# ---------------------------------------------------------------------------
def reference_forward(params, hidden_states, conv_state, lru_state):
    B, L, D = hidden_states.shape
    N = params["linear_x_w"].shape[1]
    y = hidden_states @ params["linear_y_w"]
    x = hidden_states @ params["linear_x_w"] + params["linear_x_b"]
    W = conv_state.shape[1]
    padded = jnp.concatenate([conv_state, x], axis=1)
    x_conv = params["conv_b"] + sum(
        padded[:, k:k + L, :] * params["conv_w"][k] for k in range(W + 1))
    conv_state_out = padded[:, L:L + W, :]

    nb = params["gate_x_w"].shape[0]
    dper = N // nb
    xg = x_conv.reshape(B, L, nb, dper)
    gate_x = jnp.einsum("blhd,hde->blhe", xg, params["gate_x_w"]).reshape(B, L, N)
    gate_a = jnp.einsum("blhd,hde->blhe", xg, params["gate_a_w"]).reshape(B, L, N)
    gate_x = _sigmoid(gate_x + params["gate_x_b"].reshape(-1))
    gate_a = _sigmoid(gate_a + params["gate_a_b"].reshape(-1))
    log_a = -8.0 * gate_a * _softplus(params["A"])
    a = jnp.exp(log_a)
    xin = x_conv * gate_x * jnp.sqrt(1.0 - a * a)
    gy = _gelu_tanh(y + params["y_bias"])

    def step(h, inp):
        a_t, x_t, gy_t = inp
        h = a_t * h + x_t
        return h, h * gy_t

    hT, outs = lax.scan(step, lru_state,
                        (a.transpose(1, 0, 2), xin.transpose(1, 0, 2),
                         gy.transpose(1, 0, 2)))
    out_lru = outs.transpose(1, 0, 2)
    out = out_lru @ params["linear_out_w"] + params["linear_out_b"]
    return out, conv_state_out, hT


# ---------------------------------------------------------------------------
# deterministic parameter init (shapes from Recurrent.__init__, tp_size=1)
# ---------------------------------------------------------------------------
def init_params(key, width, lru_width, d_conv, num_heads):
    dper = lru_width // num_heads
    ks = jax.random.split(key, 12)
    s = 0.1
    f32 = jnp.float32
    return {
        "linear_x_w": jax.random.normal(ks[0], (width, lru_width), f32) * s,
        "linear_x_b": jax.random.normal(ks[1], (lru_width,), f32) * s,
        "linear_y_w": jax.random.normal(ks[2], (width, lru_width), f32) * s,
        "y_bias": jax.random.normal(ks[3], (lru_width,), f32) * s,
        "conv_w": jax.random.normal(ks[4], (d_conv, lru_width), f32) * s,
        "conv_b": jax.random.normal(ks[5], (lru_width,), f32) * s,
        "gate_x_w": jax.random.normal(ks[6], (num_heads, dper, dper), f32) * s,
        "gate_x_b": jax.random.normal(ks[7], (num_heads, dper), f32) * s,
        "gate_a_w": jax.random.normal(ks[8], (num_heads, dper, dper), f32) * s,
        "gate_a_b": jax.random.normal(ks[9], (num_heads, dper), f32) * s,
        "A": jax.random.normal(ks[10], (lru_width,), f32) * s,
        "linear_out_w": jax.random.normal(ks[11], (lru_width, width), f32) * s,
        "linear_out_b": jnp.zeros((width,), f32),
    }


if __name__ == "__main__":
    B, L, width, lru_width, d_conv, num_heads = 2, 8, 32, 32, 4, 2
    key = jax.random.PRNGKey(0)
    kp, kx = jax.random.split(key, 2)
    params = init_params(kp, width, lru_width, d_conv, num_heads)

    hidden_states = jax.random.normal(kx, (B, L, width), jnp.float32)
    conv_state = jnp.zeros((B, d_conv - 1, lru_width), jnp.float32)  # fresh context
    lru_state = jnp.zeros((B, lru_width), jnp.float32)
    host_request_types = jnp.zeros((B,), jnp.int32)   # 0 == context (prefill)
    last_token_ids = jnp.full((B,), L, jnp.int32)

    out, conv_state_out, lru_state_out = recurrent_forward(
        params, hidden_states, conv_state, lru_state,
        host_request_types, last_token_ids)
    jax.block_until_ready((out, conv_state_out, lru_state_out))

    ref_out, ref_conv, ref_lru = reference_forward(
        params, hidden_states, conv_state, lru_state)

    assert out.shape == (B, L, width)
    assert conv_state_out.shape == (B, d_conv - 1, lru_width)
    assert lru_state_out.shape == (B, lru_width)
    assert float(jnp.max(jnp.abs(out - ref_out))) < 1e-3
    assert float(jnp.max(jnp.abs(conv_state_out - ref_conv))) < 1e-3
    assert float(jnp.max(jnp.abs(lru_state_out - ref_lru))) < 1e-3
    print("KERNEL_OK")
</pallas_src>

<mosaic_0001>
module attributes {stable_mosaic.version = 11 : i64} {
  func.func @_linear_xy_kernel(%arg0: i32, %arg1: i32, %arg2: i32, %arg3: memref<16x32xf32, #tpu.memory_space<vmem>>, %arg4: memref<32x32xf32, #tpu.memory_space<vmem>>, %arg5: memref<32x32xf32, #tpu.memory_space<vmem>>, %arg6: memref<1x32xf32, #tpu.memory_space<vmem>>, %arg7: memref<16x32xf32, #tpu.memory_space<vmem>>, %arg8: memref<16x32xf32, #tpu.memory_space<vmem>>, %arg9: memref<16x32xf32, #tpu.memory_space<vmem>>, %arg10: memref<16x32xf32, #tpu.memory_space<vmem>>) attributes {dimension_semantics = [#tpu.dimension_semantics<parallel>, #tpu.dimension_semantics<parallel>, #tpu.dimension_semantics<arbitrary>], iteration_bounds = array<i64: 1, 1, 1>, scalar_prefetch = 0 : i64, scratch_operands = 2 : i64, tpu.core_type = #tpu.core_type<tc>, window_params = [{transform_indices = @transform_0, window_bounds = array<i64: 16, 32>}, {transform_indices = @transform_1, window_bounds = array<i64: 32, 32>}, {transform_indices = @transform_2, window_bounds = array<i64: 32, 32>}, {transform_indices = @transform_3, window_bounds = array<i64: 1, 32>}, {transform_indices = @transform_4, window_bounds = array<i64: 16, 32>}, {transform_indices = @transform_5, window_bounds = array<i64: 16, 32>}]} {
    %c0_i32 = arith.constant 0 : i32
    %0 = arith.cmpi eq, %arg2, %c0_i32 : i32
    %1 = arith.extui %0 : i1 to i32
    %c0_i32_0 = arith.constant 0 : i32
    %2 = arith.cmpi ne, %1, %c0_i32_0 : i32
    scf.if %2 {
      %cst_17 = arith.constant 0.000000e+00 : f32
      %17 = vector.broadcast %cst_17 : f32 to vector<16x32xf32>
      %c0_18 = arith.constant 0 : index
      %c0_19 = arith.constant 0 : index
      %18 = vector.load %arg9[%c0_18, %c0_19] : memref<16x32xf32, #tpu.memory_space<vmem>>, vector<16x32xf32>
      tpu.vector_store %arg9[%c0_18, %c0_19], %17 {strides = array<i32>} : memref<16x32xf32, #tpu.memory_space<vmem>>, vector<16x32xf32>,
      %cst_20 = arith.constant 0.000000e+00 : f32
      %19 = vector.broadcast %cst_20 : f32 to vector<16x32xf32>
      %c0_21 = arith.constant 0 : index
      %c0_22 = arith.constant 0 : index
      %20 = vector.load %arg10[%c0_21, %c0_22] : memref<16x32xf32, #tpu.memory_space<vmem>>, vector<16x32xf32>
      tpu.vector_store %arg10[%c0_21, %c0_22], %19 {strides = array<i32>} : memref<16x32xf32, #tpu.memory_space<vmem>>, vector<16x32xf32>,
    } else {
    }
    %c0 = arith.constant 0 : index
    %c0_1 = arith.constant 0 : index
    %3 = vector.load %arg3[%c0, %c0_1] : memref<16x32xf32, #tpu.memory_space<vmem>>, vector<16x32xf32>
    %c0_2 = arith.constant 0 : index
    %c0_3 = arith.constant 0 : index
    %4 = vector.load %arg9[%c0_2, %c0_3] : memref<16x32xf32, #tpu.memory_space<vmem>>, vector<16x32xf32>
    %c0_4 = arith.constant 0 : index
    %c0_5 = arith.constant 0 : index
    %5 = vector.load %arg4[%c0_4, %c0_5] : memref<32x32xf32, #tpu.memory_space<vmem>>, vector<32x32xf32>
    %cst = arith.constant dense<0.000000e+00> : vector<16x32xf32>
    %6 = tpu.matmul %3, %5, %cst {dimension_numbers = #tpu.dot_dimension_numbers<[1], [0], [0], [1], [0, 0, 1, 1], [], []>} : vector<16x32xf32>, vector<32x32xf32>, vector<16x32xf32> -> vector<16x32xf32>
    %7 = arith.addf %4, %6 : vector<16x32xf32>
    %c0_6 = arith.constant 0 : index
    %c0_7 = arith.constant 0 : index
    %8 = vector.load %arg9[%c0_6, %c0_7] : memref<16x32xf32, #tpu.memory_space<vmem>>, vector<16x32xf32>
    tpu.vector_store %arg9[%c0_6, %c0_7], %7 {strides = array<i32>} : memref<16x32xf32, #tpu.memory_space<vmem>>, vector<16x32xf32>,
    %c0_8 = arith.constant 0 : index
    %c0_9 = arith.constant 0 : index
    %9 = vector.load %arg10[%c0_8, %c0_9] : memref<16x32xf32, #tpu.memory_space<vmem>>, vector<16x32xf32>
    %c0_10 = arith.constant 0 : index
    %c0_11 = arith.constant 0 : index
    %10 = vector.load %arg5[%c0_10, %c0_11] : memref<32x32xf32, #tpu.memory_space<vmem>>, vector<32x32xf32>
    %cst_12 = arith.constant dense<0.000000e+00> : vector<16x32xf32>
    %11 = tpu.matmul %3, %10, %cst_12 {dimension_numbers = #tpu.dot_dimension_numbers<[1], [0], [0], [1], [0, 0, 1, 1], [], []>} : vector<16x32xf32>, vector<32x32xf32>, vector<16x32xf32> -> vector<16x32xf32>
    %12 = arith.addf %9, %11 : vector<16x32xf32>
    %c0_13 = arith.constant 0 : index
    %c0_14 = arith.constant 0 : index
    %13 = vector.load %arg10[%c0_13, %c0_14] : memref<16x32xf32, #tpu.memory_space<vmem>>, vector<16x32xf32>
    tpu.vector_store %arg10[%c0_13, %c0_14], %12 {strides = array<i32>} : memref<16x32xf32, #tpu.memory_space<vmem>>, vector<16x32xf32>,
    %c0_i32_15 = arith.constant 0 : i32
    %14 = arith.cmpi eq, %arg2, %c0_i32_15 : i32
    %15 = arith.extui %14 : i1 to i32
    %c0_i32_16 = arith.constant 0 : i32
    %16 = arith.cmpi ne, %15, %c0_i32_16 : i32
    scf.if %16 {
      %c0_17 = arith.constant 0 : index
      %c0_18 = arith.constant 0 : index
      %17 = vector.load %arg9[%c0_17, %c0_18] : memref<16x32xf32, #tpu.memory_space<vmem>>, vector<16x32xf32>
      %c0_19 = arith.constant 0 : index
      %c0_20 = arith.constant 0 : index
      %18 = vector.load %arg7[%c0_19, %c0_20] : memref<16x32xf32, #tpu.memory_space<vmem>>, vector<16x32xf32>
      tpu.vector_store %arg7[%c0_19, %c0_20], %17 {strides = array<i32>} : memref<16x32xf32, #tpu.memory_space<vmem>>, vector<16x32xf32>,
      %c0_21 = arith.constant 0 : index
      %c0_22 = arith.constant 0 : index
      %19 = vector.load %arg10[%c0_21, %c0_22] : memref<16x32xf32, #tpu.memory_space<vmem>>, vector<16x32xf32>
      %c0_23 = arith.constant 0 : index
      %c0_24 = arith.constant 0 : index
      %20 = vector.load %arg6[%c0_23, %c0_24] : memref<1x32xf32, #tpu.memory_space<vmem>>, vector<1x32xf32>
      %21 = vector.broadcast %20 : vector<1x32xf32> to vector<16x32xf32>
      %22 = arith.addf %19, %21 : vector<16x32xf32>
      %c0_25 = arith.constant 0 : index
      %c0_26 = arith.constant 0 : index
      %23 = vector.load %arg8[%c0_25, %c0_26] : memref<16x32xf32, #tpu.memory_space<vmem>>, vector<16x32xf32>
      tpu.vector_store %arg8[%c0_25, %c0_26], %22 {strides = array<i32>} : memref<16x32xf32, #tpu.memory_space<vmem>>, vector<16x32xf32>,
    } else {
    }
    return
  }
  func.func @transform_0(%arg0: i32, %arg1: i32, %arg2: i32) -> (i32, i32) {
    %c0_i32 = arith.constant 0 : i32
    return %arg0, %arg2 : i32, i32
  }
  func.func @transform_1(%arg0: i32, %arg1: i32, %arg2: i32) -> (i32, i32) {
    %c0_i32 = arith.constant 0 : i32
    return %arg2, %arg1 : i32, i32
  }
  func.func @transform_2(%arg0: i32, %arg1: i32, %arg2: i32) -> (i32, i32) {
    %c0_i32 = arith.constant 0 : i32
    return %arg2, %arg1 : i32, i32
  }
  func.func @transform_3(%arg0: i32, %arg1: i32, %arg2: i32) -> (i32, i32) {
    %c0_i32 = arith.constant 0 : i32
    %c0_i32_0 = arith.constant 0 : i32
    return %c0_i32, %arg1 : i32, i32
  }
  func.func @transform_4(%arg0: i32, %arg1: i32, %arg2: i32) -> (i32, i32) {
    %c0_i32 = arith.constant 0 : i32
    return %arg0, %arg1 : i32, i32
  }
  func.func @transform_5(%arg0: i32, %arg1: i32, %arg2: i32) -> (i32, i32) {
    %c0_i32 = arith.constant 0 : i32
    return %arg0, %arg1 : i32, i32
  }
}

</mosaic_0001>

<llo_original>
// kernel: tpu_custom_call.1
$region0: #{tpu_custom_call.1}
  #allocation0 [shape = 'u32[]', space=smem, size = 0x4, offset = 0x4, fixed_abs, tag = 'smem constant byte address 0x4 - core index']
  #allocation1 [shape = 'u32[72,128]{1,0:T(1,128)}', space=vmem, size = 0x9000, scoped, tag = 'internal scratch']
  #allocation2 [shape = 'f32[16,32]{1,0:T(8,128)}', space=vmem, size = 0x2000, scoped, tag = 'scratch operand']
  #allocation3 [shape = 'f32[16,32]{1,0:T(8,128)}', space=vmem, size = 0x2000, scoped, tag = 'scratch operand']
  %s0 = inlined_call_operand.hbm [shape: f32[16,32], index: 0, kind: input, shape index: {}]
  %s1 = inlined_call_operand.hbm [shape: f32[32,32], index: 1, kind: input, shape index: {}]
  %s2 = inlined_call_operand.hbm [shape: f32[32,32], index: 2, kind: input, shape index: {}]
  %s3 = inlined_call_operand.vmem [shape: f32[1,32], index: 3, kind: input, shape index: {}]
  %s4 = inlined_call_operand.hbm [shape: f32[16,32], index: 4, kind: output, shape index: {0}]
  %s5 = inlined_call_operand.hbm [shape: f32[16,32], index: 5, kind: output, shape index: {1}]
  %6 = xla_tuple %s4, %s5
  %s7 = sld [smem:[#allocation0]]
  $region54: #{tpu_custom_call.1} parent=0
    _
  %s9 = ssub.s32 1, %s7
  %s10 = scalar_select 0, %s9, %s7
  $region1: #{tpu_custom_call.1} parent=0
    #allocation4 [shape = 'u8[8192]{0}', space=vmem, size = 0x2000, scoped, tag = 'input window, operand 0, single buffered']
    #allocation5 [shape = 's32[1]{0}', space=sflag, size = 0x4, scoped, tag = 'scoped memory for tpu_custom_call.1']
    #allocation6 [shape = 's32[1]{0}', space=sflag, size = 0x4, scoped, tag = 'scoped memory for tpu_custom_call.1']
    #allocation7 [shape = 'u8[16384]{0}', space=vmem, size = 0x4000, scoped, tag = 'input window, operand 1, single buffered']
    #allocation8 [shape = 's32[1]{0}', space=sflag, size = 0x4, scoped, tag = 'scoped memory for tpu_custom_call.1']
    #allocation9 [shape = 'u8[16384]{0}', space=vmem, size = 0x4000, scoped, tag = 'input window, operand 2, single buffered']
    #allocation10 [shape = 'u8[8192]{0}', space=vmem, size = 0x2000, scoped, tag = 'output window, operand 0, single buffered']
    #allocation11 [shape = 'u8[8192]{0}', space=vmem, size = 0x2000, scoped, tag = 'output window, operand 1, single buffered']
    #allocation12 [shape = 's32[1]{0}', space=sflag, size = 0x4, scoped, tag = 'scoped memory for tpu_custom_call.1']
    %11 = vsyncpa [#allocation5], 0
    %12 = vsyncpa [#allocation8], 0
    %13 = vsyncpa [#allocation6], 0
    %14 = vsyncpa [#allocation12], 0
    // Predicated region
    $region2: #{tpu_custom_call.1} parent=1 // pred_check
      _
    $region3: #{tpu_custom_call.1} parent=1 // pred_check_branch
      %16 = sbr.rel (0) target = $region5
    $region4: #{tpu_custom_call.1} parent=1 // pred_region
      %18 = vsyncadd [#allocation5], 0
      %s19 = sshll.u32 %s0, 4
      %s20 = int_to_ptr.hbm [resolvable:$true] %s19
      %s21 = sshll.u32 [#allocation4], 4
      %s22 = int_to_ptr.vmem [resolvable:$true] %s21
      %27 = dma.hbm_to_vmem [thread:$0]  %s20, 256, %s22, [#allocation5], 128, 128, 8
    $region5: #{tpu_custom_call.1} parent=1 // pred_fallthru
      _
    // Predicated region
    $region6: #{tpu_custom_call.1} parent=1 // pred_check
      _
    $region7: #{tpu_custom_call.1} parent=1 // pred_check_branch
      %29 = sbr.rel (0) target = $region9
    $region8: #{tpu_custom_call.1} parent=1 // pred_region
      %31 = vsyncadd [#allocation8], 0
      %s32 = sshll.u32 %s1, 4
      %s33 = int_to_ptr.hbm [resolvable:$true] %s32
      %s34 = sshll.u32 [#allocation7], 4
      %s35 = int_to_ptr.vmem [resolvable:$true] %s34
      %40 = dma.hbm_to_vmem [thread:$0]  %s33, 512, %s35, [#allocation8], 128, 128, 8
    $region9: #{tpu_custom_call.1} parent=1 // pred_fallthru
      _
    // Predicated region
    $region10: #{tpu_custom_call.1} parent=1 // pred_check
      _
    $region11: #{tpu_custom_call.1} parent=1 // pred_check_branch
      %42 = sbr.rel (0) target = $region13
    $region12: #{tpu_custom_call.1} parent=1 // pred_region
      %44 = vsyncadd [#allocation8], 0
      %s45 = sshll.u32 %s2, 4
      %s46 = int_to_ptr.hbm [resolvable:$true] %s45
      %s47 = sshll.u32 [#allocation9], 4
      %s48 = int_to_ptr.vmem [resolvable:$true] %s47
      %53 = dma.hbm_to_vmem [thread:$0]  %s46, 512, %s48, [#allocation8], 128, 128, 8
    $region13: #{tpu_custom_call.1} parent=1 // pred_fallthru
      _
    // Predicated region
    $region14: #{tpu_custom_call.1} parent=1 // pred_check
      _
    $region15: #{tpu_custom_call.1} parent=1 // pred_check_branch
      %55 = sbr.rel (0) target = $region17
    $region16: #{tpu_custom_call.1} parent=1 // pred_region
      _
    $region17: #{tpu_custom_call.1} parent=1 // pred_fallthru
      _
    // Predicated region
    $region18: #{tpu_custom_call.1} parent=1 // pred_check
      _
    $region19: #{tpu_custom_call.1} parent=1 // pred_check_branch
      %57 = sbr.rel (0) target = $region21
    $region20: #{tpu_custom_call.1} parent=1 // pred_region
      %59 = dma.done [#allocation5], 256
    $region21: #{tpu_custom_call.1} parent=1 // pred_fallthru
      _
    // Predicated region
    $region22: #{tpu_custom_call.1} parent=1 // pred_check
      _
    $region23: #{tpu_custom_call.1} parent=1 // pred_check_branch
      %61 = sbr.rel (0) target = $region25
    $region24: #{tpu_custom_call.1} parent=1 // pred_region
      %63 = dma.done [#allocation8], 512
    $region25: #{tpu_custom_call.1} parent=1 // pred_fallthru
      _
    // Predicated region
    $region26: #{tpu_custom_call.1} parent=1 // pred_check
      _
    $region27: #{tpu_custom_call.1} parent=1 // pred_check_branch
      %65 = sbr.rel (0) target = $region29
    $region28: #{tpu_custom_call.1} parent=1 // pred_region
      %67 = dma.done [#allocation8], 512
    $region29: #{tpu_custom_call.1} parent=1 // pred_fallthru
      _
    %p68 = scmp.eq.s32.totalorder 0, 0
    // Predicated region
    $region30: #{tpu_custom_call.1} parent=1 // pred_check
      %p69 = pneg %p68
    $region31: #{tpu_custom_call.1} parent=1 // pred_check_branch
      %71 = sbr.rel (%p69) target = $region33
    $region32: #{tpu_custom_call.1} parent=1 // pred_region
      %vm72 = vcmask 261120
      %73 = vst.msk [vmem:[#allocation2] sm:$0xff] %vm72, 0.0
      %74 = vst.msk [vmem:[#allocation2 + $0x8] sm:$0xff] %vm72, 0.0
      %75 = vst.msk [vmem:[#allocation3] sm:$0xff] %vm72, 0.0
      %76 = vst.msk [vmem:[#allocation3 + $0x8] sm:$0xff] %vm72, 0.0
    $region33: #{tpu_custom_call.1} parent=1 // pred_fallthru
      _
    %v77 = vld [vmem:[#allocation4] sm:$0xff]
    %v78 = vld [vmem:[#allocation4 + $0x8] sm:$0xff]
    %v79 = vld [vmem:[#allocation2] sm:$0xff]
    %v80 = vld [vmem:[#allocation2 + $0x8] sm:$0xff]
    %v81 = vld [vmem:[#allocation7] sm:$0xff]
    %v82 = vld [vmem:[#allocation7 + $0x8] sm:$0xff]
    %v83 = vld [vmem:[#allocation7 + $0x10] sm:$0xff]
    %v84 = vld [vmem:[#allocation7 + $0x18] sm:$0xff]
    %vm85 = vcmask 261120
    %v87 = vsel %vm85, %v77, 0
    %v90 = vsel %vm85, %v78, 0
    %92 = vmatpush.msra.mxu0 0.0
    %93 = vmatpush.msra.mxu0 0.0
    %94 = vmatpush.msra.mxu0 0.0
    %95 = vmatpush.msra.mxu0 0.0
    %96 = vmatpush.msra.mxu0 0.0
    %97 = vmatpush.msra.mxu0 0.0
    %98 = vmatpush.msra.mxu0 0.0
    %99 = vmatpush.msra.mxu0 0.0
    %100 = vmatpush.msra.mxu0 0.0
    %101 = vmatpush.msra.mxu0 0.0
    %102 = vmatpush.msra.mxu0 0.0
    %103 = vmatpush.msra.mxu0 0.0
    %104 = vmatpush.msra.mxu0 %v84
    %105 = vmatpush.msra.mxu0 %v83
    %106 = vmatpush.msra.mxu0 %v82
    %107 = vmatpush.msra.mxu0 %v81
    %108 = vmatmul.f32.gmra.mxu0 %v87
    %v109 = vpop.f32.mrf.mxu0
    %v110 = vadd.f32 0.0, %v109
    %111 = vmatmul.f32.gmra.mxu0 %v90
    %v112 = vpop.f32.mrf.mxu0
    %v113 = vadd.f32 0.0, %v112
    %114 = vdwg.mxu0
    %v115 = vadd.f32 %v79, %v110
    %v116 = vadd.f32 %v80, %v113
    %117 = vst.msk [vmem:[#allocation2] sm:$0xff] %vm85, %v115
    %118 = vst.msk [vmem:[#allocation2 + $0x8] sm:$0xff] %vm85, %v116
    %v119 = vld [vmem:[#allocation3] sm:$0xff]
    %v120 = vld [vmem:[#allocation3 + $0x8] sm:$0xff]
    %v121 = vld [vmem:[#allocation9] sm:$0xff]
    %v122 = vld [vmem:[#allocation9 + $0x8] sm:$0xff]
    %v123 = vld [vmem:[#allocation9 + $0x10] sm:$0xff]
    %v124 = vld [vmem:[#allocation9 + $0x18] sm:$0xff]
    %125 = vmatpush.msra.mxu0 0.0
    %126 = vmatpush.msra.mxu0 0.0
    %127 = vmatpush.msra.mxu0 0.0
    %128 = vmatpush.msra.mxu0 0.0
    %129 = vmatpush.msra.mxu0 0.0
    %130 = vmatpush.msra.mxu0 0.0
    %131 = vmatpush.msra.mxu0 0.0
    %132 = vmatpush.msra.mxu0 0.0
    %133 = vmatpush.msra.mxu0 0.0
    %134 = vmatpush.msra.mxu0 0.0
    %135 = vmatpush.msra.mxu0 0.0
    %136 = vmatpush.msra.mxu0 0.0
    %137 = vmatpush.msra.mxu0 %v124
    %138 = vmatpush.msra.mxu0 %v123
    %139 = vmatpush.msra.mxu0 %v122
    %140 = vmatpush.msra.mxu0 %v121
    %141 = vmatmul.f32.gmra.mxu0 %v87
    %v142 = vpop.f32.mrf.mxu0
    %v143 = vadd.f32 0.0, %v142
    %144 = vmatmul.f32.gmra.mxu0 %v90
    %v145 = vpop.f32.mrf.mxu0
    %v146 = vadd.f32 0.0, %v145
    %147 = vdwg.mxu0
    %v148 = vadd.f32 %v119, %v143
    %v149 = vadd.f32 %v120, %v146
    %150 = vst.msk [vmem:[#allocation3] sm:$0xff] %vm85, %v148
    %151 = vst.msk [vmem:[#allocation3 + $0x8] sm:$0xff] %vm85, %v149
    // Predicated region
    $region34: #{tpu_custom_call.1} parent=1 // pred_check
      %p152 = pneg %p68
    $region35: #{tpu_custom_call.1} parent=1 // pred_check_branch
      %154 = sbr.rel (%p152) target = $region37
    $region36: #{tpu_custom_call.1} parent=1 // pred_region
      %v155 = vld [vmem:[#allocation2] sm:$0xff]
      %v156 = vld [vmem:[#allocation2 + $0x8] sm:$0xff]
      %157 = vst.msk [vmem:[#allocation10] sm:$0xff] %vm85, %v155
      %158 = vst.msk [vmem:[#allocation10 + $0x8] sm:$0xff] %vm85, %v156
      %v159 = vld [vmem:[#allocation3] sm:$0xff]
      %v160 = vld [vmem:[#allocation3 + $0x8] sm:$0xff]
      %v161 = vld [vmem:[%s3] sm:$0x1]
      %v163 = vperm.slane %v161, 0
      %v165 = vadd.f32 %v159, %v163
      %v166 = vadd.f32 %v160, %v163
      %167 = vst.msk [vmem:[#allocation11] sm:$0xff] %vm85, %v165
      %168 = vst.msk [vmem:[#allocation11 + $0x8] sm:$0xff] %vm85, %v166
    $region37: #{tpu_custom_call.1} parent=1 // pred_fallthru
      _
    // Predicated region
    $region38: #{tpu_custom_call.1} parent=1 // pred_check
      _
    $region39: #{tpu_custom_call.1} parent=1 // pred_check_branch
      %170 = sbr.rel (0) target = $region41
    $region40: #{tpu_custom_call.1} parent=1 // pred_region
      %172 = vsyncadd [#allocation6], 0
      %s173 = sshll.u32 [#allocation10], 4
      %s174 = int_to_ptr.vmem [resolvable:$true] %s173
      %s175 = sshll.u32 %s4, 4
      %s176 = int_to_ptr.hbm [resolvable:$true] %s175
      %181 = dma.vmem_to_hbm [thread:$0]  %s174, 256, %s176, [#allocation6], 128, 128, 8
    $region41: #{tpu_custom_call.1} parent=1 // pred_fallthru
      _
    // Predicated region
    $region42: #{tpu_custom_call.1} parent=1 // pred_check
      _
    $region43: #{tpu_custom_call.1} parent=1 // pred_check_branch
      %183 = sbr.rel (0) target = $region45
    $region44: #{tpu_custom_call.1} parent=1 // pred_region
      %185 = vsyncadd [#allocation12], 0
      %s186 = sshll.u32 [#allocation11], 4
      %s187 = int_to_ptr.vmem [resolvable:$true] %s186
      %s188 = sshll.u32 %s5, 4
      %s189 = int_to_ptr.hbm [resolvable:$true] %s188
      %194 = dma.vmem_to_hbm [thread:$0]  %s187, 256, %s189, [#allocation12], 128, 128, 8
    $region45: #{tpu_custom_call.1} parent=1 // pred_fallthru
      _
    // Predicated region
    $region46: #{tpu_custom_call.1} parent=1 // pred_check
      _
    $region47: #{tpu_custom_call.1} parent=1 // pred_check_branch
      %196 = sbr.rel (0) target = $region49
    $region48: #{tpu_custom_call.1} parent=1 // pred_region
      %198 = dma.done [#allocation6], 256
    $region49: #{tpu_custom_call.1} parent=1 // pred_fallthru
      _
    // Predicated region
    $region50: #{tpu_custom_call.1} parent=1 // pred_check
      _
    $region51: #{tpu_custom_call.1} parent=1 // pred_check_branch
      %200 = sbr.rel (0) target = $region53
    $region52: #{tpu_custom_call.1} parent=1 // pred_region
      %202 = dma.done [#allocation12], 256
    $region53: #{tpu_custom_call.1} parent=1 // pred_fallthru
      _
    %203 = vsyncpa [#allocation5], 1
    %204 = vsyncpa [#allocation8], 1
    %205 = vsyncpa [#allocation6], 1
    %206 = vsyncpa [#allocation12], 1

</llo_original>
